<compile_context>
chip_gen: v5e
topology: v5e:2x2
jax: 0.10.0
libtpu: 0.0.40
codegen_flags: <defaults>
</compile_context>

<pallas_src>
import jax
import jax.numpy as jnp
from jax.experimental import pallas as pl
from jax.experimental.pallas import tpu as pltpu


def _tpu_vmem_capacity():
    try:
        return int(pltpu.get_tpu_info().vmem_capacity_bytes)
    except Exception:
        return 64 * 1024 * 1024  # conservative (v7x-sized) fallback


def _is_multi_tensorcore():
    """Heuristic: v7x-class chips (2 TCs/chip) have 64 MiB VMEM per TC."""
    try:
        if "v7" in jax.devices()[0].device_kind.lower():
            return True
    except Exception:
        pass
    return _tpu_vmem_capacity() <= (64 << 20)


def _choose_blocks(T, FB, L, M, dtype):
    """Pick (timestep block TT, lane block LB, vmem_limit_bytes).

    Budgets the *padded* VMEM footprint: sublane padding of the merged F*B
    axis, the padded weight tile, and double-buffered input/output streams.
    """
    itemsize = jnp.dtype(dtype).itemsize
    sub_min = 8 * max(1, 4 // itemsize)               # 8 (f32) / 16 (bf16) / 32 (i8)
    fb_pad = -(-FB // sub_min) * sub_min

    vmem_cap = _tpu_vmem_capacity()
    if vmem_cap <= (64 << 20):                        # v7x-class: 64 MiB / TensorCore
        vmem_limit = 40 << 20
        per_block_cap = 2 << 20
    else:                                             # v5e / v6e: 128 MiB
        vmem_limit = 96 << 20
        per_block_cap = 6 << 20
    buf_budget = (vmem_limit * 3) // 4                # headroom for temps/spills

    streams = 2 * (M + 1)                             # double-buffered inputs + output
    w_per_t = (-(-M // 8) * 8) * (-(-FB // 128) * 128) * 4   # padded f32 weight row
    per_t = fb_pad * L * itemsize                     # one modality, one timestep
    full_row_cost = streams * per_t + 2 * w_per_t

    if full_row_cost > buf_budget and L > 128:
        # A single timestep row doesn't fit: tile the lane axis too (keeps
        # stores 128-aligned and gives enough grid steps to shard across TCs).
        TT = 1
        avail = max(buf_budget - 2 * w_per_t, streams * fb_pad * 128 * itemsize)
        LB = (avail // (streams * fb_pad * itemsize)) // 128 * 128
        LB = int(max(128, min(LB, L)))
    else:
        TT = max(1, min(per_block_cap // max(per_t, 1),
                        buf_budget // max(full_row_cost, 1)))
        TT = int(min(TT, T))
        if _is_multi_tensorcore() and T >= 2:
            TT = min(TT, -(-T // 2))                  # >=2 grid steps only on v7x-class
        LB = L
    return TT, LB, vmem_limit


def _make_qmixture_kernel(M, tt, lb, lane_chunk, row_chunk):
    """Weighted sum over modalities, chunked so the f32 accumulator stays in vregs.

    Refs: w_ref [TT, M, FB] (f32), reps_0..reps_{M-1} [TT, FB, LB], o_ref [TT, FB, LB].
    """
    def kernel(w_ref, *refs):
        o_ref = refs[M]
        for r0 in range(0, tt, row_chunk):
            r1 = min(r0 + row_chunk, tt)
            w = w_ref[r0:r1].astype(jnp.float32)            # [rc, M, FB]
            w_m = [w[:, m, :, None] for m in range(M)]      # hoisted lane splats
            for c0 in range(0, lb, lane_chunk):
                c1 = min(c0 + lane_chunk, lb)
                # Per-chunk f32 upcast + multiply-add on the VPU (HBM-bound op).
                acc = refs[0][r0:r1, :, c0:c1].astype(jnp.float32) * w_m[0]
                for m in range(1, M):
                    acc = acc + refs[m][r0:r1, :, c0:c1].astype(jnp.float32) * w_m[m]
                o_ref[r0:r1, :, c0:c1] = acc.astype(o_ref.dtype)
    return kernel


def qmixture_pallas(reps_list, w_tmfb, *, block_override=None):
    """reps_list: M arrays [T, F*B, L]; w_tmfb: [T, M, F*B] f32 -> out [T, F*B, L]."""
    M = len(reps_list)
    T, FB, L = reps_list[0].shape
    dtype = reps_list[0].dtype

    TT, LB, vmem_limit = _choose_blocks(T, FB, L, M, dtype)
    if block_override is not None:
        TT, LB = block_override
    tile_lanes = LB < L

    # In-kernel chunk sizes: keep the f32 accumulator chunk <= ~64 KiB (vregs).
    itemsize = jnp.dtype(dtype).itemsize
    sub_min = 8 * max(1, 4 // itemsize)
    fb_pad = -(-FB // sub_min) * sub_min
    lane_chunk = min(LB, 512)
    row_chunk = max(1, (64 << 10) // max(1, fb_pad * lane_chunk * 4))
    row_chunk = min(row_chunk, TT)
    # Bound the unrolled chunk count (compile time); bigger chunks only spill.
    while (-(-TT // row_chunk)) * (-(-LB // lane_chunk)) > 128:
        if row_chunk < TT:
            row_chunk = min(TT, row_chunk * 2)
        elif lane_chunk < LB:
            lane_chunk = min(LB, lane_chunk * 2)
        else:
            break

    if tile_lanes:
        grid = (pl.cdiv(T, TT), pl.cdiv(L, LB))
        rep_spec = pl.BlockSpec((TT, FB, LB), lambda i, j: (i, 0, j))
        out_spec = pl.BlockSpec((TT, FB, LB), lambda i, j: (i, 0, j))
        w_spec = pl.BlockSpec((TT, M, FB), lambda i, j: (i, 0, 0))
        dims = ("parallel", "parallel")
    else:
        grid = (pl.cdiv(T, TT),)
        rep_spec = pl.BlockSpec((TT, FB, L), lambda i: (i, 0, 0))
        out_spec = pl.BlockSpec((TT, FB, L), lambda i: (i, 0, 0))
        w_spec = pl.BlockSpec((TT, M, FB), lambda i: (i, 0, 0))
        dims = ("parallel",)

    # TODO(synk): on v7x, verify in xprof that the "parallel" axes shard across
    # both TensorCores; if not, switch the leading axis to pltpu.CORE_PARALLEL.
    return pl.pallas_call(
        _make_qmixture_kernel(M, TT, LB, lane_chunk, row_chunk),
        out_shape=jax.ShapeDtypeStruct((T, FB, L), dtype),
        grid_spec=pltpu.PrefetchScalarGridSpec(
            num_scalar_prefetch=0,
            grid=grid,
            in_specs=[w_spec] + [rep_spec] * M,
            out_specs=out_spec,
        ),
        compiler_params=pltpu.CompilerParams(
            dimension_semantics=dims,
            vmem_limit_bytes=vmem_limit,
        ),
    )(w_tmfb, *reps_list)


def qmixture_forward(inputs):
    """Mirrors QMixture.forward: inputs = [in_modalities, weights].

    in_modalities may be either:
      * a list of M dense arrays of shape [T, F, B, E, E] (pre-packed fast path), or
      * the module-native list[M] of list[T] of list[F] of [B, E, E] arrays.
    weights: [B, T, M].  Returns list[T] of list[F] of [B, E, E].
    """
    if not isinstance(inputs, list):
        raise ValueError('This layer should be called on a list of 2 inputs.')
    if len(inputs) != 2:
        raise ValueError('This layer should be called on a list of 2 inputs.'
                         'Got ' + str(len(inputs)) + ' inputs.')
    in_modalities, weights = inputs
    M = len(in_modalities)

    if hasattr(in_modalities[0], "ndim") and in_modalities[0].ndim == 5:
        # Pre-packed fast path: no HBM repacking, just a free contiguous reshape
        # that merges F and B into the sublane axis and E*E into the lane axis.
        T, F, B, E, _ = in_modalities[0].shape
        reps_list = [r.reshape(T, F * B, E * E) for r in in_modalities]
    else:
        T = len(in_modalities[0])
        F = len(in_modalities[0][0])
        B, E, _ = in_modalities[0][0][0].shape
        # Glue path (costs one extra HBM read+write of all modality data;
        # prefer the pre-packed path for this bandwidth-bound op).
        reps_list = [
            jnp.stack([jnp.stack([in_modalities[m][t][f] for f in range(F)], axis=0)
                       for t in range(T)], axis=0).reshape(T, F * B, E * E)
            for m in range(M)
        ]

    # Uniform dtype across modalities (promote & cast if mixed).
    common = jnp.result_type(*[r.dtype for r in reps_list])
    reps_list = [r.astype(common) for r in reps_list]

    # TODO(synk): if E*E is not a multiple of 128, restructure the trailing
    # axis (fold E into the sublane axis) to avoid masked vst stores.

    # weights [B, T, M] -> [T, M, F*B]; merged row index f*B + b matches the
    # reps' merged sublane axis, so the kernel broadcast is a free lane splat.
    w_tmb = jnp.transpose(weights, (1, 2, 0)).astype(jnp.float32)        # [T, M, B]
    w_tmfb = jnp.broadcast_to(w_tmb[:, :, None, :], (T, M, F, B)).reshape(T, M, F * B)

    out = qmixture_pallas(reps_list, w_tmfb)            # [T, F*B, E*E]
    out = out.reshape(T, F, B, E, E)                    # row-major i,j restored
    return [[out[t, f] for f in range(F)] for t in range(T)]


if __name__ == "__main__":
    B, E, T, M, F = 2, 16, 4, 3, 2   # batch, embed_dim, time, modalities, fields

    key = jax.random.PRNGKey(0)
    k_w, *rep_keys = jax.random.split(key, M + 1)

    # Pre-packed modality tensors (fast path): [T, F, B, E, E] each.
    packed = [jax.random.normal(rep_keys[m], (T, F, B, E, E), dtype=jnp.float32)
              for m in range(M)]
    weights = jax.nn.softmax(
        jax.random.normal(k_w, (B, T, M), dtype=jnp.float32), axis=-1)

    outputs = qmixture_forward([packed, weights])
    jax.block_until_ready(outputs)

    # Module-native list-of-lists input path.
    in_modalities = [[[packed[m][t, f] for f in range(F)] for t in range(T)]
                     for m in range(M)]
    outputs_ll = qmixture_forward([in_modalities, weights])
    jax.block_until_ready(outputs_ll)

    # Exercise the 2-D (lane-tiled) grid path with a forced small block override.
    reps_merged = [r.reshape(T, F * B, E * E) for r in packed]
    w_tmfb = jnp.broadcast_to(
        jnp.transpose(weights, (1, 2, 0)).astype(jnp.float32)[:, :, None, :],
        (T, M, F, B)).reshape(T, M, F * B)
    out_tiled = qmixture_pallas(reps_merged, w_tmfb, block_override=(1, 128))
    jax.block_until_ready(out_tiled)
    out_tiled = out_tiled.reshape(T, F, B, E, E)

    # Exercise the bf16 (per-chunk upcast) path.
    packed_bf16 = [p.astype(jnp.bfloat16) for p in packed]
    outputs_bf16 = qmixture_forward([packed_bf16, weights])
    jax.block_until_ready(outputs_bf16)

    # Pure-JAX reference (same math as the torch module).
    w_tbm = jnp.transpose(weights, (1, 0, 2))   # [T, B, M]
    ok = True
    for t in range(T):
        for f in range(F):
            stacked = jnp.stack([packed[m][t, f] for m in range(M)], axis=-1)  # [B,E,E,M]
            ref = jnp.einsum('bxym,bm->bxy', stacked, w_tbm[t])
            ok = ok and bool(jnp.allclose(outputs[t][f], ref, atol=1e-5, rtol=1e-5))
            ok = ok and bool(jnp.allclose(outputs_ll[t][f], ref, atol=1e-5, rtol=1e-5))
            ok = ok and bool(jnp.allclose(out_tiled[t, f], ref, atol=1e-5, rtol=1e-5))
            ok = ok and bool(jnp.allclose(outputs_bf16[t][f].astype(jnp.float32),
                                          ref, atol=5e-2, rtol=5e-2))
    assert ok, "Pallas QMixture output mismatch vs reference"

    print("KERNEL_OK")
</pallas_src>

<mosaic_0001>
module attributes {stable_mosaic.version = 11 : i64} {
  func.func @kernel(%arg0: i32, %arg1: memref<2x3x4xf32, #tpu.memory_space<vmem>>, %arg2: memref<2x4x256xf32, #tpu.memory_space<vmem>>, %arg3: memref<2x4x256xf32, #tpu.memory_space<vmem>>, %arg4: memref<2x4x256xf32, #tpu.memory_space<vmem>>, %arg5: memref<2x4x256xf32, #tpu.memory_space<vmem>>) attributes {dimension_semantics = [#tpu.dimension_semantics<parallel>], iteration_bounds = array<i64: 2>, scalar_prefetch = 0 : i64, scratch_operands = 0 : i64, tpu.core_type = #tpu.core_type<tc>, window_params = [{transform_indices = @transform_0, window_bounds = array<i64: 2, 3, 4>}, {transform_indices = @transform_1, window_bounds = array<i64: 2, 4, 256>}, {transform_indices = @transform_2, window_bounds = array<i64: 2, 4, 256>}, {transform_indices = @transform_3, window_bounds = array<i64: 2, 4, 256>}, {transform_indices = @transform_4, window_bounds = array<i64: 2, 4, 256>}]} {
    %c0 = arith.constant 0 : index
    %c0_0 = arith.constant 0 : index
    %c0_1 = arith.constant 0 : index
    %0 = vector.load %arg1[%c0, %c0_0, %c0_1] : memref<2x3x4xf32, #tpu.memory_space<vmem>>, vector<2x3x4xf32>
    %1 = vector.extract_strided_slice %0 {offsets = [0, 0, 0], sizes = [2, 1, 4], strides = [1, 1, 1]} : vector<2x3x4xf32> to vector<2x1x4xf32>
    %2 = vector.shape_cast %1 : vector<2x1x4xf32> to vector<2x4xf32>
    %3 = vector.shape_cast %2 : vector<2x4xf32> to vector<2x4x1xf32>
    %4 = vector.extract_strided_slice %0 {offsets = [0, 1, 0], sizes = [2, 1, 4], strides = [1, 1, 1]} : vector<2x3x4xf32> to vector<2x1x4xf32>
    %5 = vector.shape_cast %4 : vector<2x1x4xf32> to vector<2x4xf32>
    %6 = vector.shape_cast %5 : vector<2x4xf32> to vector<2x4x1xf32>
    %7 = vector.extract_strided_slice %0 {offsets = [0, 2, 0], sizes = [2, 1, 4], strides = [1, 1, 1]} : vector<2x3x4xf32> to vector<2x1x4xf32>
    %8 = vector.shape_cast %7 : vector<2x1x4xf32> to vector<2x4xf32>
    %9 = vector.shape_cast %8 : vector<2x4xf32> to vector<2x4x1xf32>
    %c0_2 = arith.constant 0 : index
    %c0_3 = arith.constant 0 : index
    %c0_4 = arith.constant 0 : index
    %10 = vector.load %arg2[%c0_2, %c0_3, %c0_4] : memref<2x4x256xf32, #tpu.memory_space<vmem>>, vector<2x4x256xf32>
    %11 = vector.broadcast %3 : vector<2x4x1xf32> to vector<2x4x256xf32>
    %12 = arith.mulf %10, %11 : vector<2x4x256xf32>
    %c0_5 = arith.constant 0 : index
    %c0_6 = arith.constant 0 : index
    %c0_7 = arith.constant 0 : index
    %13 = vector.load %arg3[%c0_5, %c0_6, %c0_7] : memref<2x4x256xf32, #tpu.memory_space<vmem>>, vector<2x4x256xf32>
    %14 = vector.broadcast %6 : vector<2x4x1xf32> to vector<2x4x256xf32>
    %15 = arith.mulf %13, %14 : vector<2x4x256xf32>
    %16 = arith.addf %12, %15 : vector<2x4x256xf32>
    %c0_8 = arith.constant 0 : index
    %c0_9 = arith.constant 0 : index
    %c0_10 = arith.constant 0 : index
    %17 = vector.load %arg4[%c0_8, %c0_9, %c0_10] : memref<2x4x256xf32, #tpu.memory_space<vmem>>, vector<2x4x256xf32>
    %18 = vector.broadcast %9 : vector<2x4x1xf32> to vector<2x4x256xf32>
    %19 = arith.mulf %17, %18 : vector<2x4x256xf32>
    %20 = arith.addf %16, %19 : vector<2x4x256xf32>
    %c0_11 = arith.constant 0 : index
    %c0_12 = arith.constant 0 : index
    %c0_13 = arith.constant 0 : index
    %21 = vector.load %arg5[%c0_11, %c0_12, %c0_13] : memref<2x4x256xf32, #tpu.memory_space<vmem>>, vector<2x4x256xf32>
    tpu.vector_store %arg5[%c0_11, %c0_12, %c0_13], %20 {strides = array<i32>} : memref<2x4x256xf32, #tpu.memory_space<vmem>>, vector<2x4x256xf32>,
    return
  }
  func.func @transform_0(%arg0: i32) -> (i32, i32, i32) {
    %c0_i32 = arith.constant 0 : i32
    %c0_i32_0 = arith.constant 0 : i32
    %c0_i32_1 = arith.constant 0 : i32
    return %arg0, %c0_i32, %c0_i32_0 : i32, i32, i32
  }
  func.func @transform_1(%arg0: i32) -> (i32, i32, i32) {
    %c0_i32 = arith.constant 0 : i32
    %c0_i32_0 = arith.constant 0 : i32
    %c0_i32_1 = arith.constant 0 : i32
    return %arg0, %c0_i32, %c0_i32_0 : i32, i32, i32
  }
  func.func @transform_2(%arg0: i32) -> (i32, i32, i32) {
    %c0_i32 = arith.constant 0 : i32
    %c0_i32_0 = arith.constant 0 : i32
    %c0_i32_1 = arith.constant 0 : i32
    return %arg0, %c0_i32, %c0_i32_0 : i32, i32, i32
  }
  func.func @transform_3(%arg0: i32) -> (i32, i32, i32) {
    %c0_i32 = arith.constant 0 : i32
    %c0_i32_0 = arith.constant 0 : i32
    %c0_i32_1 = arith.constant 0 : i32
    return %arg0, %c0_i32, %c0_i32_0 : i32, i32, i32
  }
  func.func @transform_4(%arg0: i32) -> (i32, i32, i32) {
    %c0_i32 = arith.constant 0 : i32
    %c0_i32_0 = arith.constant 0 : i32
    %c0_i32_1 = arith.constant 0 : i32
    return %arg0, %c0_i32, %c0_i32_0 : i32, i32, i32
  }
}

</mosaic_0001>

<llo_original>
// kernel: tpu_custom_call.1
$region0: #{tpu_custom_call.1}
  #allocation0 [shape = 'u32[]', space=smem, size = 0x4, offset = 0x4, fixed_abs, tag = 'smem constant byte address 0x4 - core index']
  #allocation1 [shape = 'u32[72,128]{1,0:T(1,128)}', space=vmem, size = 0x9000, scoped, tag = 'internal scratch']
  %s0 = inlined_call_operand.vmem [shape: f32[4,3,4], index: 0, kind: input, shape index: {}]
  %s1 = inlined_call_operand.hbm [shape: f32[4,4,256], index: 1, kind: input, shape index: {}]
  %s2 = inlined_call_operand.hbm [shape: f32[4,4,256], index: 2, kind: input, shape index: {}]
  %s3 = inlined_call_operand.hbm [shape: f32[4,4,256], index: 3, kind: input, shape index: {}]
  %s4 = inlined_call_operand.hbm [shape: f32[4,4,256], index: 4, kind: output, shape index: {}]
  %s5 = sld [smem:[#allocation0]]
  $region61: #{tpu_custom_call.1} parent=0
    _
  %s7 = ssub.s32 1, %s5
  %s8 = scalar_select 0, %s7, %s5
  $region1: #{tpu_custom_call.1} parent=0
    #allocation2 [shape = 'u8[16384]{0}', space=vmem, size = 0x4000, scoped, tag = 'input window, operand 1']
    #allocation3 [shape = 's32[2]{0}', space=sflag, size = 0x8, scoped, tag = 'scoped memory for tpu_custom_call.1']
    #allocation4 [shape = 's32[2]{0}', space=sflag, size = 0x8, scoped, tag = 'scoped memory for tpu_custom_call.1']
    #allocation5 [shape = 'u8[16384]{0}', space=vmem, size = 0x4000, scoped, tag = 'input window, operand 2']
    #allocation6 [shape = 's32[2]{0}', space=sflag, size = 0x8, scoped, tag = 'scoped memory for tpu_custom_call.1']
    #allocation7 [shape = 'u8[16384]{0}', space=vmem, size = 0x4000, scoped, tag = 'input window, operand 3']
    #allocation8 [shape = 'u8[16384]{0}', space=vmem, size = 0x4000, scoped, tag = 'output window, operand 0']
    %9 = vsyncpa [#allocation3], 0
    %s10 = scalar_lea.sflag [#allocation3], 1
    %11 = vsyncpa %s10, 0
    %12 = vsyncpa [#allocation6], 0
    %s13 = scalar_lea.sflag [#allocation6], 1
    %14 = vsyncpa %s13, 0
    %15 = vsyncpa [#allocation4], 0
    %s16 = scalar_lea.sflag [#allocation4], 1
    %17 = vsyncpa %s16, 0
    loop: start=0, step=1, limit=4
    $region2: #{tpu_custom_call.1} parent=1 // loop_pre_header
      _
    $region3: #{tpu_custom_call.1} parent=1 // loop_header
      %s19 = sphi 0, %s23
      %p20 = scmp.ge.s32.totalorder %s19, 4
      %s29 = sphi 0, %s31
      %s32 = sphi 0, %s29
      %s33 = sphi 0, %s32
      %s49 = sphi 0, %s33
      %s55 = sphi 0, %s57
      %s58 = sphi 0, %s55
      %s59 = sphi 0, %s58
      %s75 = sphi 0, %s59
      %s81 = sphi 0, %s83
      %s84 = sphi 0, %s81
      %s85 = sphi 0, %s84
      %s101 = sphi 0, %s85
      %s107 = sphi 0, %s109
      %s110 = sphi 0, %s107
      %s111 = sphi 0, %s110
      %s127 = sphi 0, %s111
      %s133 = sphi 0, %s135
      %s136 = sphi 0, %s133
      %s137 = sphi 0, %s136
      %s153 = sphi 0, %s137
    $region4: #{tpu_custom_call.1} parent=1 // loop_header_branch
      %22 = sbr.rel (%p20) target = $region8
    $region5: #{tpu_custom_call.1} parent=1 // loop_body
      %s24 = ssub.s32 %s19, 1
      %s25 = ssub.s32 %s19, 2
      %s26 = sadd.s32 %s19, 1
      %s27 = ssub.s32 %s19, %s26
      %p28 = scmp.eq.s32.totalorder %s27, 0
      %s30 = sadd.s32 %s29, 1
      %s31 = scalar_select %p28, %s29, %s30
      %p34 = pneg %p28
      %p35 = scmp.eq.s32.totalorder %s19, 1
      %p36 = por %p34, %p35
      %p37 = scmp.ne.s32.totalorder %s29, %s32
      %p38 = scmp.eq.s32.totalorder %s19, 0
      %p39 = por %p37, %p38
      %p40 = scmp.ne.s32.totalorder %s29, %s32
      %p41 = scmp.eq.s32.totalorder %s24, 1
      %p42 = por %p40, %p41
      %p43 = scmp.ne.s32.totalorder %s32, %s33
      %p44 = scmp.eq.s32.totalorder %s24, 0
      %p45 = por %p43, %p44
      %p46 = scmp.ne.s32.totalorder %s32, %s33
      %p47 = scmp.eq.s32.totalorder %s25, 1
      %p48 = por %p46, %p47
      %p50 = scmp.ne.s32.totalorder %s33, %s49
      %p51 = scmp.eq.s32.totalorder %s25, 0
      %p52 = por %p50, %p51
      %s53 = ssub.s32 %s19, %s26
      %p54 = scmp.eq.s32.totalorder %s53, 0
      %s56 = sadd.s32 %s55, 1
      %s57 = scalar_select %p54, %s55, %s56
      %p60 = pneg %p54
      %p61 = scmp.eq.s32.totalorder %s19, 1
      %p62 = por %p60, %p61
      %p63 = scmp.ne.s32.totalorder %s55, %s58
      %p64 = scmp.eq.s32.totalorder %s19, 0
      %p65 = por %p63, %p64
      %p66 = scmp.ne.s32.totalorder %s55, %s58
      %p67 = scmp.eq.s32.totalorder %s24, 1
      %p68 = por %p66, %p67
      %p69 = scmp.ne.s32.totalorder %s58, %s59
      %p70 = scmp.eq.s32.totalorder %s24, 0
      %p71 = por %p69, %p70
      %p72 = scmp.ne.s32.totalorder %s58, %s59
      %p73 = scmp.eq.s32.totalorder %s25, 1
      %p74 = por %p72, %p73
      %p76 = scmp.ne.s32.totalorder %s59, %s75
      %p77 = scmp.eq.s32.totalorder %s25, 0
      %p78 = por %p76, %p77
      %s79 = ssub.s32 %s19, %s26
      %p80 = scmp.eq.s32.totalorder %s79, 0
      %s82 = sadd.s32 %s81, 1
      %s83 = scalar_select %p80, %s81, %s82
      %p86 = pneg %p80
      %p87 = scmp.eq.s32.totalorder %s19, 1
      %p88 = por %p86, %p87
      %p89 = scmp.ne.s32.totalorder %s81, %s84
      %p90 = scmp.eq.s32.totalorder %s19, 0
      %p91 = por %p89, %p90
      %p92 = scmp.ne.s32.totalorder %s81, %s84
      %p93 = scmp.eq.s32.totalorder %s24, 1
      %p94 = por %p92, %p93
      %p95 = scmp.ne.s32.totalorder %s84, %s85
      %p96 = scmp.eq.s32.totalorder %s24, 0
      %p97 = por %p95, %p96
      %p98 = scmp.ne.s32.totalorder %s84, %s85
      %p99 = scmp.eq.s32.totalorder %s25, 1
      %p100 = por %p98, %p99
      %p102 = scmp.ne.s32.totalorder %s85, %s101
      %p103 = scmp.eq.s32.totalorder %s25, 0
      %p104 = por %p102, %p103
      %s105 = ssub.s32 %s19, %s26
      %p106 = scmp.eq.s32.totalorder %s105, 0
      %s108 = sadd.s32 %s107, 1
      %s109 = scalar_select %p106, %s107, %s108
      %p112 = pneg %p106
      %p113 = scmp.eq.s32.totalorder %s19, 1
      %p114 = por %p112, %p113
      %p115 = scmp.ne.s32.totalorder %s107, %s110
      %p116 = scmp.eq.s32.totalorder %s19, 0
      %p117 = por %p115, %p116
      %p118 = scmp.ne.s32.totalorder %s107, %s110
      %p119 = scmp.eq.s32.totalorder %s24, 1
      %p120 = por %p118, %p119
      %p121 = scmp.ne.s32.totalorder %s110, %s111
      %p122 = scmp.eq.s32.totalorder %s24, 0
      %p123 = por %p121, %p122
      %p124 = scmp.ne.s32.totalorder %s110, %s111
      %p125 = scmp.eq.s32.totalorder %s25, 1
      %p126 = por %p124, %p125
      %p128 = scmp.ne.s32.totalorder %s111, %s127
      %p129 = scmp.eq.s32.totalorder %s25, 0
      %p130 = por %p128, %p129
      %s131 = ssub.s32 %s19, %s26
      %p132 = scmp.eq.s32.totalorder %s131, 0
      %s134 = sadd.s32 %s133, 1
      %s135 = scalar_select %p132, %s133, %s134
      %p138 = pneg %p132
      %p139 = scmp.eq.s32.totalorder %s19, 1
      %p140 = por %p138, %p139
      %p141 = scmp.ne.s32.totalorder %s133, %s136
      %p142 = scmp.eq.s32.totalorder %s19, 0
      %p143 = por %p141, %p142
      %p144 = scmp.ne.s32.totalorder %s133, %s136
      %p145 = scmp.eq.s32.totalorder %s24, 1
      %p146 = por %p144, %p145
      %p147 = scmp.ne.s32.totalorder %s136, %s137
      %p148 = scmp.eq.s32.totalorder %s24, 0
      %p149 = por %p147, %p148
      %p150 = scmp.ne.s32.totalorder %s136, %s137
      %p151 = scmp.eq.s32.totalorder %s25, 1
      %p152 = por %p150, %p151
      %p154 = scmp.ne.s32.totalorder %s137, %s153
      %p155 = scmp.eq.s32.totalorder %s25, 0
      %p156 = por %p154, %p155
      %p157 = scmp.le.s32.totalorder 1, %s19
      %p158 = scmp.lt.s32.totalorder %s19, 3
      %p159 = pnand %p157, %p158
      %p160 = pneg %p159
      // Predicated region
      $region9: #{tpu_custom_call.1} parent=5 // pred_check
        _
      $region10: #{tpu_custom_call.1} parent=5 // pred_check_branch
        %162 = sbr.rel (%p159) target = $region12
      $region11: #{tpu_custom_call.1} parent=5 // pred_region
        %s163 = ssub.s32 %s19, 1
      $region12: #{tpu_custom_call.1} parent=5 // pred_fallthru
        _
      %p164 = scmp.lt.s32.totalorder %s19, 2
      // Predicated region
      $region13: #{tpu_custom_call.1} parent=5 // pred_check
        %p165 = pneg %p164
      $region14: #{tpu_custom_call.1} parent=5 // pred_check_branch
        %167 = sbr.rel (%p165) target = $region16
      $region15: #{tpu_custom_call.1} parent=5 // pred_region
        // Predicated region
        $region17: #{tpu_custom_call.1} parent=15 // pred_check
          %p168 = pneg %p39
        $region18: #{tpu_custom_call.1} parent=15 // pred_check_branch
          %170 = sbr.rel (%p168) target = $region20
        $region19: #{tpu_custom_call.1} parent=15 // pred_region
          %s171 = smul.u32 2, %s19
          %p172 = scmp.lt.s32.totalorder %s171, 3
          %s173 = scalar_select %p172, %s171, 3
          %s174 = smul.addr %s173, 4
          %s175 = scalar_lea.vmem %s0, %s174
          %s176 = smul.u32 2, %s19
        $region20: #{tpu_custom_call.1} parent=15 // pred_fallthru
          _
        // Predicated region
        $region21: #{tpu_custom_call.1} parent=15 // pred_check
          %p177 = pneg %p65
        $region22: #{tpu_custom_call.1} parent=15 // pred_check_branch
          %179 = sbr.rel (%p177) target = $region24
        $region23: #{tpu_custom_call.1} parent=15 // pred_region
          %s180 = sand.u32 %s55, 1
          %s181 = scalar_lea.sflag [#allocation3], %s180
          %s182 = sand.u32 %s55, 1
          %s183 = smul.addr %s182, 16
          %s184 = scalar_lea.vmem [#allocation2], %s183
          %s185 = smul.u32 2, %s19
          %187 = vsyncadd %s181, 0
          %s188 = smul.addr %s185, 2
          %s189 = smul.addr %s188, 4
          %s190 = scalar_lea.hbm %s1, %s189
          %s191 = sshll.u32 %s190, 4
          %s192 = int_to_ptr.hbm [resolvable:$true] %s191
          %s193 = sshll.u32 %s184, 4
          %s194 = int_to_ptr.vmem [resolvable:$true] %s193
          %199 = dma.hbm_to_vmem [thread:$0]  %s192, 256, %s194, %s181, 128, 128, 8
        $region24: #{tpu_custom_call.1} parent=15 // pred_fallthru
          _
        // Predicated region
        $region25: #{tpu_custom_call.1} parent=15 // pred_check
          %p200 = pneg %p91
        $region26: #{tpu_custom_call.1} parent=15 // pred_check_branch
          %202 = sbr.rel (%p200) target = $region28
        $region27: #{tpu_custom_call.1} parent=15 // pred_region
          %s203 = sand.u32 %s19, 1
          %s204 = scalar_lea.sflag [#allocation6], %s203
          %s205 = sand.u32 %s81, 1
          %s206 = smul.addr %s205, 16
          %s207 = scalar_lea.vmem [#allocation5], %s206
          %s208 = smul.u32 2, %s19
          %210 = vsyncadd %s204, 0
          %s211 = smul.addr %s208, 2
          %s212 = smul.addr %s211, 4
          %s213 = scalar_lea.hbm %s2, %s212
          %s214 = sshll.u32 %s213, 4
          %s215 = int_to_ptr.hbm [resolvable:$true] %s214
          %s216 = sshll.u32 %s207, 4
          %s217 = int_to_ptr.vmem [resolvable:$true] %s216
          %222 = dma.hbm_to_vmem [thread:$0]  %s215, 256, %s217, %s204, 128, 128, 8
        $region28: #{tpu_custom_call.1} parent=15 // pred_fallthru
          _
        // Predicated region
        $region29: #{tpu_custom_call.1} parent=15 // pred_check
          %p223 = pneg %p117
        $region30: #{tpu_custom_call.1} parent=15 // pred_check_branch
          %225 = sbr.rel (%p223) target = $region32
        $region31: #{tpu_custom_call.1} parent=15 // pred_region
          %s226 = sand.u32 %s19, 1
          %s227 = scalar_lea.sflag [#allocation6], %s226
          %s228 = sand.u32 %s107, 1
          %s229 = smul.addr %s228, 16
          %s230 = scalar_lea.vmem [#allocation7], %s229
          %s231 = smul.u32 2, %s19
          %233 = vsyncadd %s227, 0
          %s234 = smul.addr %s231, 2
          %s235 = smul.addr %s234, 4
          %s236 = scalar_lea.hbm %s3, %s235
          %s237 = sshll.u32 %s236, 4
          %s238 = int_to_ptr.hbm [resolvable:$true] %s237
          %s239 = sshll.u32 %s230, 4
          %s240 = int_to_ptr.vmem [resolvable:$true] %s239
          %245 = dma.hbm_to_vmem [thread:$0]  %s238, 256, %s240, %s227, 128, 128, 8
        $region32: #{tpu_custom_call.1} parent=15 // pred_fallthru
          _
      $region16: #{tpu_custom_call.1} parent=5 // pred_fallthru
        _
      %p246 = scmp.le.s32.totalorder 1, %s19
      %p247 = scmp.lt.s32.totalorder %s19, 3
      %p248 = pnand %p246, %p247
      %p249 = pneg %p248
      // Predicated region
      $region33: #{tpu_custom_call.1} parent=5 // pred_check
        _
      $region34: #{tpu_custom_call.1} parent=5 // pred_check_branch
        %251 = sbr.rel (%p248) target = $region36
      $region35: #{tpu_custom_call.1} parent=5 // pred_region
        %s252 = ssub.s32 %s19, 1
        %s253 = sand.u32 %s58, 1
        %s254 = scalar_lea.sflag [#allocation3], %s253
        %s255 = sand.u32 %s58, 1
        %s256 = smul.addr %s255, 16
        %s257 = scalar_lea.vmem [#allocation2], %s256
        // Predicated region
        $region37: #{tpu_custom_call.1} parent=35 // pred_check
          %p258 = pneg %p71
        $region38: #{tpu_custom_call.1} parent=35 // pred_check_branch
          %260 = sbr.rel (%p258) target = $region40
        $region39: #{tpu_custom_call.1} parent=35 // pred_region
          %262 = dma.done %s254, 256
        $region40: #{tpu_custom_call.1} parent=35 // pred_fallthru
          _
        %s263 = sand.u32 %s24, 1
        %s264 = scalar_lea.sflag [#allocation6], %s263
        %s265 = sand.u32 %s84, 1
        %s266 = smul.addr %s265, 16
        %s267 = scalar_lea.vmem [#allocation5], %s266
        // Predicated region
        $region41: #{tpu_custom_call.1} parent=35 // pred_check
          %p268 = pneg %p97
        $region42: #{tpu_custom_call.1} parent=35 // pred_check_branch
          %270 = sbr.rel (%p268) target = $region44
        $region43: #{tpu_custom_call.1} parent=35 // pred_region
          %272 = dma.done %s264, 256
        $region44: #{tpu_custom_call.1} parent=35 // pred_fallthru
          _
        %s273 = sand.u32 %s24, 1
        %s274 = scalar_lea.sflag [#allocation6], %s273
        %s275 = sand.u32 %s110, 1
        %s276 = smul.addr %s275, 16
        %s277 = scalar_lea.vmem [#allocation7], %s276
        // Predicated region
        $region45: #{tpu_custom_call.1} parent=35 // pred_check
          %p278 = pneg %p123
        $region46: #{tpu_custom_call.1} parent=35 // pred_check_branch
          %280 = sbr.rel (%p278) target = $region48
        $region47: #{tpu_custom_call.1} parent=35 // pred_region
          %282 = dma.done %s274, 256
        $region48: #{tpu_custom_call.1} parent=35 // pred_fallthru
          _
        %s283 = smul.u32 2, %s24
        %p284 = scmp.lt.s32.totalorder %s283, 3
        %s285 = scalar_select %p284, %s283, 3
        %s286 = smul.addr %s285, 4
        %s287 = scalar_lea.vmem %s0, %s286
        %p288 = pneg %p45
        %p289 = pneg %p42
        %s290 = sand.u32 %s58, 1
        %s291 = scalar_lea.sflag [#allocation3], %s290
        %s292 = sand.u32 %s58, 1
        %s293 = smul.addr %s292, 16
        %s294 = scalar_lea.vmem [#allocation2], %s293
        %p295 = pneg %p71
        %p296 = pneg %p68
        %s297 = sand.u32 %s24, 1
        %s298 = scalar_lea.sflag [#allocation6], %s297
        %s299 = sand.u32 %s84, 1
        %s300 = smul.addr %s299, 16
        %s301 = scalar_lea.vmem [#allocation5], %s300
        %p302 = pneg %p97
        %p303 = pneg %p94
        %s304 = sand.u32 %s24, 1
        %s305 = scalar_lea.sflag [#allocation6], %s304
        %s306 = sand.u32 %s110, 1
        %s307 = smul.addr %s306, 16
        %s308 = scalar_lea.vmem [#allocation7], %s307
        %p309 = pneg %p123
        %p310 = pneg %p120
        %p311 = pneg %p149
        %p312 = pneg %p146
        %s313 = sand.u32 %s136, 1
        %s314 = scalar_lea.sflag [#allocation4], %s313
        %s315 = sand.u32 %s136, 1
        %s316 = smul.addr %s315, 16
        %s317 = scalar_lea.vmem [#allocation8], %s316
        %s318 = smul.u32 2, %s24
        %p319 = scmp.lt.s32.totalorder %s318, 3
        %s320 = scalar_select %p319, %s318, 3
        %s321 = smul.addr %s320, 4
        %s322 = scalar_lea.vmem %s0, %s321
        %s323 = smul.u32 2, %s24
        %s324 = smul.u32 2, %s24
        %s325 = smul.u32 2, %s24
        %s326 = smul.u32 2, %s24
        %s327 = smul.u32 2, %s24
        %v328 = vld [vmem:[%s322] sm:$0x7]
        %v329 = vld [vmem:[%s322 + $0x4] sm:$0x7]
        %v330 = vperm.slane %v328, 0
        %v331 = vlaneseq
        %v332 = vshrl.u32 %v331, 7
        %334 = vset.pattern.permute.xlu0 %v332
        %335 = vperm.xlu0 %334, %v330
        %v336 = vpop.permute.xlu0 %335
        %v337 = vperm.slane %v329, 0
        %v338 = vlaneseq
        %v339 = vshrl.u32 %v338, 7
        %341 = vset.pattern.permute.xlu0 %v339
        %342 = vperm.xlu0 %341, %v337
        %v343 = vpop.permute.xlu0 %342
        %v344 = vperm.slane %v328, 1
        %v345 = vlaneseq
        %v346 = vshrl.u32 %v345, 7
        %348 = vset.pattern.permute.xlu0 %v346
        %349 = vperm.xlu0 %348, %v344
        %v350 = vpop.permute.xlu0 %349
        %v351 = vperm.slane %v329, 1
        %v352 = vlaneseq
        %v353 = vshrl.u32 %v352, 7
        %355 = vset.pattern.permute.xlu0 %v353
        %356 = vperm.xlu0 %355, %v351
        %v357 = vpop.permute.xlu0 %356
        %v358 = vperm.slane %v328, 2
        %v359 = vlaneseq
        %v360 = vshrl.u32 %v359, 7
        %362 = vset.pattern.permute.xlu0 %v360
        %363 = vperm.xlu0 %362, %v358
        %v364 = vpop.permute.xlu0 %363
        %v365 = vperm.slane %v329, 2
        %v366 = vlaneseq
        %v367 = vshrl.u32 %v366, 7
        %369 = vset.pattern.permute.xlu0 %v367
        %370 = vperm.xlu0 %369, %v365
        %v371 = vpop.permute.xlu0 %370
        %v372 = vld [vmem:[%s257] sm:$0xff]
        %v373 = vld [vmem:[%s257 + $0x8] sm:$0xff]
        %v377 = vunpack.c.l.s4 839922192
        %v378 = vunpack.c.0.s8 %v377
        %v379 = vperm.slane %v336, %v378
        %v381 = vunpack.c.l.s4 839922192
        %v382 = vunpack.c.0.s8 %v381
        %v383 = vperm.slane %v343, %v382
        %v386 = vmul.f32 %v372, %v379
        %v387 = vmul.f32 %v373, %v383
        %v388 = vld [vmem:[%s267] sm:$0xff]
        %v389 = vld [vmem:[%s267 + $0x8] sm:$0xff]
        %v393 = vunpack.c.l.s4 839922192
        %v394 = vunpack.c.0.s8 %v393
        %v395 = vperm.slane %v350, %v394
        %v397 = vunpack.c.l.s4 839922192
        %v398 = vunpack.c.0.s8 %v397
        %v399 = vperm.slane %v357, %v398
        %v402 = vmul.f32 %v388, %v395
        %v403 = vmul.f32 %v389, %v399
        %v404 = vadd.f32 %v386, %v402
        %v405 = vadd.f32 %v387, %v403
        %v406 = vld [vmem:[%s277] sm:$0xff]
        %v407 = vld [vmem:[%s277 + $0x8] sm:$0xff]
        %v411 = vunpack.c.l.s4 839922192
        %v412 = vunpack.c.0.s8 %v411
        %v413 = vperm.slane %v364, %v412
        %v415 = vunpack.c.l.s4 839922192
        %v416 = vunpack.c.0.s8 %v415
        %v417 = vperm.slane %v371, %v416
        %v420 = vmul.f32 %v406, %v413
        %v421 = vmul.f32 %v407, %v417
        %v422 = vadd.f32 %v404, %v420
        %v423 = vadd.f32 %v405, %v421
        %424 = vst [vmem:[%s317] sm:$0xff] %v422
        %425 = vst [vmem:[%s317 + $0x8] sm:$0xff] %v423
        %s426 = sand.u32 %s136, 1
        %s427 = scalar_lea.sflag [#allocation4], %s426
        %s428 = sand.u32 %s136, 1
        %s429 = smul.addr %s428, 16
        %s430 = scalar_lea.vmem [#allocation8], %s429
        // Predicated region
        $region49: #{tpu_custom_call.1} parent=35 // pred_check
          %p431 = pneg %p146
        $region50: #{tpu_custom_call.1} parent=35 // pred_check_branch
          %433 = sbr.rel (%p431) target = $region52
        $region51: #{tpu_custom_call.1} parent=35 // pred_region
          %s434 = smul.u32 2, %s24
          %436 = vsyncadd %s427, 0
          %s437 = smul.addr %s434, 2
          %s438 = smul.addr %s437, 4
          %s439 = scalar_lea.hbm %s4, %s438
          %s440 = sshll.u32 %s430, 4
          %s441 = int_to_ptr.vmem [resolvable:$true] %s440
          %s442 = sshll.u32 %s439, 4
          %s443 = int_to_ptr.hbm [resolvable:$true] %s442
          %448 = dma.vmem_to_hbm [thread:$0]  %s441, 256, %s443, %s427, 128, 128, 8
        $region52: #{tpu_custom_call.1} parent=35 // pred_fallthru
          _
      $region36: #{tpu_custom_call.1} parent=5 // pred_fallthru
        _
      %p449 = scmp.le.s32.totalorder 2, %s19
      // Predicated region
      $region53: #{tpu_custom_call.1} parent=5 // pred_check
        %p450 = pneg %p449
      $region54: #{tpu_custom_call.1} parent=5 // pred_check_branch
        %452 = sbr.rel (%p450) target = $region56
      $region55: #{tpu_custom_call.1} parent=5 // pred_region
        %s453 = ssub.s32 %s19, 2
        // Predicated region
        $region57: #{tpu_custom_call.1} parent=55 // pred_check
          %p454 = pneg %p152
        $region58: #{tpu_custom_call.1} parent=55 // pred_check_branch
          %456 = sbr.rel (%p454) target = $region60
        $region59: #{tpu_custom_call.1} parent=55 // pred_region
          %s457 = sand.u32 %s137, 1
          %s458 = scalar_lea.sflag [#allocation4], %s457
          %s459 = sand.u32 %s137, 1
          %s460 = smul.addr %s459, 16
          %s461 = scalar_lea.vmem [#allocation8], %s460
          %463 = dma.done %s458, 256
        $region60: #{tpu_custom_call.1} parent=55 // pred_fallthru
          _
      $region56: #{tpu_custom_call.1} parent=5 // pred_fallthru
        _
    $region6: #{tpu_custom_call.1} parent=1 // loop_footer
      %s23 = sadd.s32 1, %s19
    $region7: #{tpu_custom_call.1} parent=1 // loop_footer_branch
      %18 = sbr.rel target = $region3
    $region8: #{tpu_custom_call.1} parent=1 // loop_exit
      _
    %464 = vsyncpa [#allocation3], 1
    %s465 = scalar_lea.sflag [#allocation3], 1
    %466 = vsyncpa %s465, 1
    %467 = vsyncpa [#allocation6], 1
    %s468 = scalar_lea.sflag [#allocation6], 1
    %469 = vsyncpa %s468, 1
    %470 = vsyncpa [#allocation4], 1
    %s471 = scalar_lea.sflag [#allocation4], 1
    %472 = vsyncpa %s471, 1

</llo_original>
